<compile_context>
chip_gen: v7x
topology: tpu7x:2x2x1
jax: 0.10.0
libtpu: 0.0.40
codegen_flags: <defaults>
</compile_context>

<pallas_src>
import jax
import jax.numpy as jnp
from jax.experimental import pallas as pl
from jax.experimental.pallas import tpu as pltpu

# Hyper-parameters.
VOCAB_SIZE = 50
EMBED_SIZE = 32                     # E
NUM_FILTERS = 32                    # F (== EMBED_SIZE, see note above)
FILTER_SIZES = (2, 3, 4)
OUTPUT_SIZE = 2                     # O
PAD_IDX = 1
BATCH = 2                           # B
SEQ_LEN = 8                         # S
DROPOUT = 0.5                       # eval-mode => identity

BS = BATCH * SEQ_LEN                          # rows of flattened (B*S, E) embedding
MAX_FS = max(FILTER_SIZES)                    # number of conv "taps" (4)
KP = MAX_FS * EMBED_SIZE                      # folded contraction depth (128)
CAT = NUM_FILTERS * len(FILTER_SIZES)         # concatenated feature width (96)
FP = ((CAT + 127) // 128) * 128               # lane-aligned feature width (128)
OP = 128                                      # lane-dense (padded) output width

assert NUM_FILTERS == EMBED_SIZE, (
    "PyTorch Linear(embedding_size*len(filter_sizes), output) requires "
    "num_filters == embedding_size")


def _cnn_kernel(emb_ref,    # (BS, E)   f32  flattened embedded text, row r = b*S + t
                w_ref,      # (KP, FP)  bf16 all conv taps folded into K (tap-major rows)
                b_ref,      # (1, FP)   f32  conv biases (zero-padded)
                mask_ref,   # (S, FP)   f32  1.0 where t is a valid output position
                lw_ref,     # (FP, OP)  bf16 linear weight (zero pad rows/cols)
                lb_ref,     # (1, OP)   f32  linear bias (zero-padded)
                out_ref):   # (B, OP)   f32  real logits live in [:, :OUTPUT_SIZE]
    emb = emb_ref[...]                                        # (BS, E)

    # --- im2col along lanes (XLU rolls): lane block i of `lhs` holds row r+i --
    # Rolled rows that wrap across a batch boundary only influence positions
    # t >= S - fs + 1 (or multiply zero-weight taps), which the validity mask
    # below removes, so numerics match the reference exactly.
    lhs = jnp.concatenate(
        [emb] + [pltpu.roll(emb, shift=BS - i, axis=0) for i in range(1, MAX_FS)],
        axis=1)                                               # (BS, KP) = (16, 128)

    # --- every convolution, every tap, in ONE MXU matmul (K = 128) -----------
    acc = jnp.dot(lhs.astype(jnp.bfloat16), w_ref[...],
                  preferred_element_type=jnp.float32)         # (BS, FP)
    acc = jnp.maximum(acc + b_ref[...], 0.0)                  # conv bias + ReLU

    # --- max over time: precomputed multiplicative mask (post-ReLU only!) ----
    acc = acc.reshape(BATCH, SEQ_LEN, FP) * mask_ref[...]
    pooled = jnp.max(acc, axis=1)                             # (B, FP); pad cols stay 0

    # TODO(synk): nn.Dropout omitted — eval-mode dropout is the identity.
    out_ref[...] = (jnp.dot(pooled.astype(jnp.bfloat16), lw_ref[...],
                            preferred_element_type=jnp.float32)
                    + lb_ref[...])                            # (B, OP) lane-dense


def init_params(key):
    n_fs = len(FILTER_SIZES)
    keys = jax.random.split(key, 2 * n_fs + 3)
    embed = 0.1 * jax.random.normal(keys[0], (VOCAB_SIZE, EMBED_SIZE), jnp.float32)
    embed = embed.at[PAD_IDX].set(0.0)                        # padding_idx semantics
    conv_params = []
    for n, fs in enumerate(FILTER_SIZES):
        w = 0.1 * jax.random.normal(keys[1 + 2 * n],
                                    (NUM_FILTERS, fs, EMBED_SIZE), jnp.float32)
        b = 0.1 * jax.random.normal(keys[2 + 2 * n], (NUM_FILTERS,), jnp.float32)
        conv_params.append((w, b))
    lin_w = 0.1 * jax.random.normal(keys[-2], (OUTPUT_SIZE, CAT), jnp.float32)
    lin_b = 0.1 * jax.random.normal(keys[-1], (OUTPUT_SIZE,), jnp.float32)
    return embed, conv_params, lin_w, lin_b


def pack_params(params):
    """Pack conv/linear params into fused, lane-aligned kernel operands.

    Runs ONCE at init (hoisted out of the per-call path)."""
    embed_tbl, conv_params, lin_w, lin_b = params
    pad = FP - CAT

    # Folded conv weight: row block i (E rows) holds tap i of every conv,
    # zeros where a conv has fewer than i+1 taps.  Shape (KP, FP) = (128, 128).
    row_blocks = []
    for i in range(MAX_FS):
        cols = []
        for (w, _), fs in zip(conv_params, FILTER_SIZES):
            if i < fs:
                cols.append(w[:, i, :].T)                               # (E, F)
            else:
                cols.append(jnp.zeros((EMBED_SIZE, NUM_FILTERS), jnp.float32))
        if pad:
            cols.append(jnp.zeros((EMBED_SIZE, pad), jnp.float32))
        row_blocks.append(jnp.concatenate(cols, axis=1))                # (E, FP)
    w_k = jnp.concatenate(row_blocks, axis=0).astype(jnp.bfloat16)      # (KP, FP)

    b_all = jnp.concatenate(
        [b for _, b in conv_params]
        + ([jnp.zeros((pad,), jnp.float32)] if pad else [])).reshape(1, FP)

    # Multiplicative validity mask over (t, feature column): 1.0 where t is a
    # valid conv-output position for that column's filter size, else 0.0.
    mask_cols = []
    for fs in FILTER_SIZES:
        valid = (jnp.arange(SEQ_LEN) < (SEQ_LEN - fs + 1)).astype(jnp.float32)
        mask_cols.append(jnp.tile(valid[:, None], (1, NUM_FILTERS)))    # (S, F)
    if pad:
        mask_cols.append(jnp.zeros((SEQ_LEN, pad), jnp.float32))
    mask = jnp.concatenate(mask_cols, axis=1)                           # (S, FP)

    # Lane-dense linear: (FP, OP) weight + (1, OP) bias; real outputs in [:, :O].
    lw_pad = jnp.zeros((FP, OP), jnp.float32)
    lw_pad = lw_pad.at[:CAT, :OUTPUT_SIZE].set(lin_w.T).astype(jnp.bfloat16)
    lb_pad = jnp.zeros((1, OP), jnp.float32).at[0, :OUTPUT_SIZE].set(lin_b)

    return embed_tbl, w_k, b_all, mask, lw_pad, lb_pad


@jax.jit
def cnn_forward(text_sb, packed):
    """text_sb: (seq_len, batch) int32 token ids, like the PyTorch input."""
    embed_tbl, w_k, b_all, mask, lw_pad, lb_pad = packed
    # Embedding gather stays as XLA glue (fused under jit); folding it into the
    # kernel via scalar-prefetch row gather only pays off at much larger B*S.
    emb = jnp.take(embed_tbl, text_sb.T, axis=0)               # (B, S, E)
    emb2 = emb.reshape(BS, EMBED_SIZE).astype(jnp.float32)     # row r = b*S + t

    out_wide = pl.pallas_call(
        _cnn_kernel,
        out_shape=jax.ShapeDtypeStruct((BATCH, OP), jnp.float32),
    )(emb2, w_k, b_all, mask, lw_pad, lb_pad)
    return out_wide[:, :OUTPUT_SIZE]


def reference(text_sb, params):
    """Pure-JAX (f32) replica of the PyTorch forward (eval mode)."""
    embed_tbl, conv_params, lin_w, lin_b = params
    emb = jnp.take(embed_tbl, text_sb.T, axis=0)               # (B, S, E)
    feats = []
    for (w, b), fs in zip(conv_params, FILTER_SIZES):
        L = SEQ_LEN - fs + 1
        sc = jnp.stack([jnp.einsum('bwe,fwe->bf', emb[:, t:t + fs, :], w)
                        for t in range(L)], axis=-1)           # (B, F, L)
        sc = jax.nn.relu(sc + b[None, :, None])
        feats.append(jnp.max(sc, axis=-1))                     # (B, F)
    pooled = jnp.concatenate(feats, axis=1)
    return pooled @ lin_w.T + lin_b


if __name__ == "__main__":
    key = jax.random.PRNGKey(0)
    pkey, tkey = jax.random.split(key)
    params = init_params(pkey)
    packed = pack_params(params)          # hoisted: packed once, reused every call
    text = jax.random.randint(tkey, (SEQ_LEN, BATCH), 0, VOCAB_SIZE, dtype=jnp.int32)

    out = cnn_forward(text, packed)
    out = jax.block_until_ready(out)

    ref = reference(text, params)
    assert out.shape == (BATCH, OUTPUT_SIZE), out.shape
    # bf16 MXU operands (f32 accumulate) vs the pure-f32 reference -> ~1e-3 abs error.
    assert jnp.allclose(out, ref, atol=1e-2, rtol=1e-2), (out, ref)
    print("KERNEL_OK")
</pallas_src>

<mosaic_0001>
module attributes {stable_mosaic.version = 11 : i64} {
  func.func @_cnn_kernel(%arg0: memref<16x32xf32, #tpu.memory_space<vmem>>, %arg1: memref<128x128xbf16, #tpu.memory_space<vmem>>, %arg2: memref<1x128xf32, #tpu.memory_space<vmem>>, %arg3: memref<8x128xf32, #tpu.memory_space<vmem>>, %arg4: memref<128x128xbf16, #tpu.memory_space<vmem>>, %arg5: memref<1x128xf32, #tpu.memory_space<vmem>>, %arg6: memref<2x128xf32, #tpu.memory_space<vmem>>) attributes {dimension_semantics = [], scalar_prefetch = 0 : i64, scratch_operands = 0 : i64, tpu.core_type = #tpu.core_type<tc>} {
    %c0 = arith.constant 0 : index
    %c0_0 = arith.constant 0 : index
    %0 = vector.load %arg0[%c0, %c0_0] : memref<16x32xf32, #tpu.memory_space<vmem>>, vector<16x32xf32>
    %c15_i32 = arith.constant 15 : i32
    %1 = tpu.dynamic_rotate %0 by %c15_i32 dim 0 : vector<16x32xf32>, i32 -> vector<16x32xf32>
    %c14_i32 = arith.constant 14 : i32
    %2 = tpu.dynamic_rotate %0 by %c14_i32 dim 0 : vector<16x32xf32>, i32 -> vector<16x32xf32>
    %c13_i32 = arith.constant 13 : i32
    %3 = tpu.dynamic_rotate %0 by %c13_i32 dim 0 : vector<16x32xf32>, i32 -> vector<16x32xf32>
    %4 = tpu.concatenate %0, %1, %2, %3 in 1 : vector<16x32xf32>, vector<16x32xf32>, vector<16x32xf32>, vector<16x32xf32> -> vector<16x128xf32>
    %5 = arith.truncf %4 : vector<16x128xf32> to vector<16x128xbf16>
    %c0_1 = arith.constant 0 : index
    %c0_2 = arith.constant 0 : index
    %6 = vector.load %arg1[%c0_1, %c0_2] : memref<128x128xbf16, #tpu.memory_space<vmem>>, vector<128x128xbf16>
    %cst = arith.constant dense<0.000000e+00> : vector<16x128xf32>
    %7 = tpu.matmul %5, %6, %cst {dimension_numbers = #tpu.dot_dimension_numbers<[1], [0], [0], [1], [0, 0, 1, 1], [], []>} : vector<16x128xbf16>, vector<128x128xbf16>, vector<16x128xf32> -> vector<16x128xf32>
    %c0_3 = arith.constant 0 : index
    %c0_4 = arith.constant 0 : index
    %8 = vector.load %arg2[%c0_3, %c0_4] : memref<1x128xf32, #tpu.memory_space<vmem>>, vector<1x128xf32>
    %9 = vector.broadcast %8 : vector<1x128xf32> to vector<16x128xf32>
    %10 = arith.addf %7, %9 : vector<16x128xf32>
    %cst_5 = arith.constant 0.000000e+00 : f32
    %11 = vector.broadcast %cst_5 : f32 to vector<16x128xf32>
    %12 = arith.maximumf %10, %11 : vector<16x128xf32>
    %13 = vector.shape_cast %12 : vector<16x128xf32> to vector<2x8x128xf32>
    %c0_6 = arith.constant 0 : index
    %c0_7 = arith.constant 0 : index
    %14 = vector.load %arg3[%c0_6, %c0_7] : memref<8x128xf32, #tpu.memory_space<vmem>>, vector<8x128xf32>
    %15 = vector.shape_cast %14 : vector<8x128xf32> to vector<1x8x128xf32>
    %16 = vector.broadcast %15 : vector<1x8x128xf32> to vector<2x8x128xf32>
    %17 = arith.mulf %13, %16 : vector<2x8x128xf32>
    %cst_8 = arith.constant dense<0xFF800000> : vector<2x128xf32>
    %18 = vector.multi_reduction <maximumf>, %17, %cst_8 [1] : vector<2x8x128xf32> to vector<2x128xf32>
    %19 = arith.truncf %18 : vector<2x128xf32> to vector<2x128xbf16>
    %c0_9 = arith.constant 0 : index
    %c0_10 = arith.constant 0 : index
    %20 = vector.load %arg4[%c0_9, %c0_10] : memref<128x128xbf16, #tpu.memory_space<vmem>>, vector<128x128xbf16>
    %cst_11 = arith.constant dense<0.000000e+00> : vector<2x128xf32>
    %21 = tpu.matmul %19, %20, %cst_11 {dimension_numbers = #tpu.dot_dimension_numbers<[1], [0], [0], [1], [0, 0, 1, 1], [], []>} : vector<2x128xbf16>, vector<128x128xbf16>, vector<2x128xf32> -> vector<2x128xf32>
    %c0_12 = arith.constant 0 : index
    %c0_13 = arith.constant 0 : index
    %22 = vector.load %arg5[%c0_12, %c0_13] : memref<1x128xf32, #tpu.memory_space<vmem>>, vector<1x128xf32>
    %23 = vector.broadcast %22 : vector<1x128xf32> to vector<2x128xf32>
    %24 = arith.addf %21, %23 : vector<2x128xf32>
    %c0_14 = arith.constant 0 : index
    %c0_15 = arith.constant 0 : index
    %25 = vector.load %arg6[%c0_14, %c0_15] : memref<2x128xf32, #tpu.memory_space<vmem>>, vector<2x128xf32>
    tpu.vector_store %arg6[%c0_14, %c0_15], %24 {strides = array<i32>} : memref<2x128xf32, #tpu.memory_space<vmem>>, vector<2x128xf32>,
    return
  }
}

</mosaic_0001>

<llo_original>
// kernel: cnn_forward.1
$region0: #{cnn_forward.1}
  #allocation0 [shape = 'u32[]', space=smem, size = 0x4, offset = 0x4, fixed_abs, tag = 'smem constant byte address 0x4 - core index']
  #allocation1 [shape = 'u32[144,128]{1,0:T(1,128)}', space=vmem, size = 0x12000, scoped, tag = 'internal scratch']
  %s0 = inlined_call_operand.vmem [shape: f32[16,32], index: 0, kind: input, shape index: {}]
  %s1 = inlined_call_operand.vmem [shape: bf16[128,128], index: 1, kind: input, shape index: {}]
  %s2 = inlined_call_operand.vmem [shape: f32[1,128], index: 2, kind: input, shape index: {}]
  %s3 = inlined_call_operand.vmem [shape: f32[8,128], index: 3, kind: input, shape index: {}]
  %s4 = inlined_call_operand.vmem [shape: bf16[128,128], index: 4, kind: input, shape index: {}]
  %s5 = inlined_call_operand.vmem [shape: f32[1,128], index: 5, kind: input, shape index: {}]
  %s6 = inlined_call_operand.hbm [shape: f32[2,128], index: 6, kind: output, shape index: {}]
  %s7 = sld [smem:[#allocation0]]
  $region34: #{cnn_forward.1} parent=0
    _
  %s9 = ssub.s32 1, %s7
  %s10 = scalar_select 0, %s9, %s7
  $region1: #{cnn_forward.1} parent=0
    #allocation2 [shape = 'u8[1024]{0}', space=vmem, size = 0x400, scoped, tag = 'output window, operand 0, single buffered']
    #allocation3 [shape = 's32[1]{0}', space=sflag, size = 0x4, scoped, tag = 'scoped memory for cnn_forward.1']
    %11 = vsyncpa [#allocation3], 0
    // Predicated region
    $region2: #{cnn_forward.1} parent=1 // pred_check
      _
    $region3: #{cnn_forward.1} parent=1 // pred_check_branch
      %13 = sbr.rel (0) target = $region5
    $region4: #{cnn_forward.1} parent=1 // pred_region
      _
    $region5: #{cnn_forward.1} parent=1 // pred_fallthru
      _
    // Predicated region
    $region6: #{cnn_forward.1} parent=1 // pred_check
      _
    $region7: #{cnn_forward.1} parent=1 // pred_check_branch
      %15 = sbr.rel (0) target = $region9
    $region8: #{cnn_forward.1} parent=1 // pred_region
      _
    $region9: #{cnn_forward.1} parent=1 // pred_fallthru
      _
    // Predicated region
    $region10: #{cnn_forward.1} parent=1 // pred_check
      _
    $region11: #{cnn_forward.1} parent=1 // pred_check_branch
      %17 = sbr.rel (0) target = $region13
    $region12: #{cnn_forward.1} parent=1 // pred_region
      _
    $region13: #{cnn_forward.1} parent=1 // pred_fallthru
      _
    // Predicated region
    $region14: #{cnn_forward.1} parent=1 // pred_check
      _
    $region15: #{cnn_forward.1} parent=1 // pred_check_branch
      %19 = sbr.rel (0) target = $region17
    $region16: #{cnn_forward.1} parent=1 // pred_region
      _
    $region17: #{cnn_forward.1} parent=1 // pred_fallthru
      _
    // Predicated region
    $region18: #{cnn_forward.1} parent=1 // pred_check
      _
    $region19: #{cnn_forward.1} parent=1 // pred_check_branch
      %21 = sbr.rel (0) target = $region21
    $region20: #{cnn_forward.1} parent=1 // pred_region
      _
    $region21: #{cnn_forward.1} parent=1 // pred_fallthru
      _
    // Predicated region
    $region22: #{cnn_forward.1} parent=1 // pred_check
      _
    $region23: #{cnn_forward.1} parent=1 // pred_check_branch
      %23 = sbr.rel (0) target = $region25
    $region24: #{cnn_forward.1} parent=1 // pred_region
      _
    $region25: #{cnn_forward.1} parent=1 // pred_fallthru
      _
    %v25 = vld [vmem:[%s0] sm:$0xff]
    %v26 = vld [vmem:[%s0 + $0x8] sm:$0xff]
    %v27 = vrot.slane %v25, 1
    %v28 = vrot.slane %v26, 1
    %v29 = vlaneseq
    %v30 = vshrl.u32 %v29, 7
    %vm31 = vcmp.lt.s32.totalorder %v30, 7
    %v32 = vsel %vm31, %v27, %v28
    %v33 = vsel %vm31, %v28, %v27
    %v34 = vrot.slane %v25, 2
    %v35 = vrot.slane %v26, 2
    %vm36 = vcmp.lt.s32.totalorder %v30, 6
    %v37 = vsel %vm36, %v34, %v35
    %v38 = vsel %vm36, %v35, %v34
    %v39 = vrot.slane %v25, 3
    %v40 = vrot.slane %v26, 3
    %vm41 = vcmp.lt.s32.totalorder %v30, 5
    %v42 = vsel %vm41, %v39, %v40
    %v43 = vsel %vm41, %v40, %v39
    %46 = vrot.lane.b32.xlu0 %v32, 32
    %v47 = vpop.permute.xlu0 %46
    %48 = vrot.lane.b32.xlu0 %v33, 32
    %v49 = vpop.permute.xlu0 %48
    %54 = vrot.lane.b32.xlu0 %v37, 64
    %v55 = vpop.permute.xlu0 %54
    %56 = vrot.lane.b32.xlu0 %v38, 64
    %v57 = vpop.permute.xlu0 %56
    %62 = vrot.lane.b32.xlu0 %v42, 96
    %v63 = vpop.permute.xlu0 %62
    %64 = vrot.lane.b32.xlu0 %v43, 96
    %v65 = vpop.permute.xlu0 %64
    %vm68 = vcmask 261120
    %v69 = vsel %vm68, %v25, %v47
    %v70 = vsel %vm68, %v26, %v49
    %vm71 = vcmask 523264
    %v72 = vsel %vm71, %v69, %v55
    %v73 = vsel %vm71, %v70, %v57
    %vm74 = vcmask 785408
    %v75 = vsel %vm74, %v72, %v63
    %v76 = vsel %vm74, %v73, %v65
    %v77 = vpack.c.bf16 %v76, %v75
    %v78 = vld [vmem:[%s1] sm:$0xf]
    %v79 = vld [vmem:[%s1 + $0x4] sm:$0xf]
    %v80 = vld [vmem:[%s1 + $0x8] sm:$0xf]
    %v81 = vld [vmem:[%s1 + $0xc] sm:$0xf]
    %v82 = vld [vmem:[%s1 + $0x10] sm:$0xf]
    %v83 = vld [vmem:[%s1 + $0x14] sm:$0xf]
    %v84 = vld [vmem:[%s1 + $0x18] sm:$0xf]
    %v85 = vld [vmem:[%s1 + $0x1c] sm:$0xf]
    %v86 = vld [vmem:[%s1 + $0x20] sm:$0xf]
    %v87 = vld [vmem:[%s1 + $0x24] sm:$0xf]
    %v88 = vld [vmem:[%s1 + $0x28] sm:$0xf]
    %v89 = vld [vmem:[%s1 + $0x2c] sm:$0xf]
    %v90 = vld [vmem:[%s1 + $0x30] sm:$0xf]
    %v91 = vld [vmem:[%s1 + $0x34] sm:$0xf]
    %v92 = vld [vmem:[%s1 + $0x38] sm:$0xf]
    %v93 = vld [vmem:[%s1 + $0x3c] sm:$0xf]
    %v94 = vld [vmem:[%s2] sm:$0x1]
    %v96 = vlaneseq
    %v97 = vshrl.u32 %v96, 7
    %v98 = vsub.s32 0, %v97
    %v99 = vrot.slane %v94, %v98
    %v117 = vunpack.c.l.b16 %v78
    %v118 = vunpack.c.l.b16 %v79
    %v119 = vunpack.c.l.b16 %v80
    %v120 = vunpack.c.l.b16 %v81
    %v121 = vunpack.c.l.b16 %v82
    %v122 = vunpack.c.l.b16 %v83
    %v123 = vunpack.c.l.b16 %v84
    %v124 = vunpack.c.l.b16 %v85
    %v125 = vunpack.c.l.b16 %v86
    %v126 = vunpack.c.l.b16 %v87
    %v127 = vunpack.c.l.b16 %v88
    %v128 = vunpack.c.l.b16 %v89
    %v129 = vunpack.c.l.b16 %v90
    %v130 = vunpack.c.l.b16 %v91
    %v131 = vunpack.c.l.b16 %v92
    %v132 = vunpack.c.l.b16 %v93
    %v133 = vpack.c.b16 %v118, %v117
    %v134 = vpack.c.b16 %v120, %v119
    %v135 = vpack.c.b16 %v122, %v121
    %v136 = vpack.c.b16 %v124, %v123
    %v137 = vpack.c.b16 %v126, %v125
    %v138 = vpack.c.b16 %v128, %v127
    %v139 = vpack.c.b16 %v130, %v129
    %v140 = vpack.c.b16 %v132, %v131
    %149 = vmatprep.subr.bf16.mxu0 0
    %150 = vmatpush1.bf16.msra.mxu0 %v133
    %151 = vmatprep.subr.bf16.mxu0 0
    %152 = vmatpush1.bf16.msra.mxu0 %v134
    %153 = vmatprep.subr.bf16.mxu0 0
    %154 = vmatpush1.bf16.msra.mxu0 %v135
    %155 = vmatprep.subr.bf16.mxu0 0
    %156 = vmatpush1.bf16.msra.mxu0 %v136
    %157 = vmatprep.subr.bf16.mxu0 0
    %158 = vmatpush1.bf16.msra.mxu0 %v137
    %159 = vmatprep.subr.bf16.mxu0 0
    %160 = vmatpush1.bf16.msra.mxu0 %v138
    %161 = vmatprep.subr.bf16.mxu0 0
    %162 = vmatpush1.bf16.msra.mxu0 %v139
    %163 = vmatprep.subr.bf16.mxu0 0
    %164 = vmatpush1.bf16.msra.mxu0 %v140
    %165 = vmatprep.subr.bf16.mxu0 0
    %166 = vmatpush1.bf16.msra.mxu0 0
    %167 = vmatprep.subr.bf16.mxu0 0
    %168 = vmatpush1.bf16.msra.mxu0 0
    %169 = vmatprep.subr.bf16.mxu0 0
    %170 = vmatpush1.bf16.msra.mxu0 0
    %171 = vmatprep.subr.bf16.mxu0 0
    %172 = vmatpush1.bf16.msra.mxu0 0
    %173 = vmatprep.subr.bf16.mxu0 0
    %174 = vmatpush1.bf16.msra.mxu0 0
    %175 = vmatprep.subr.bf16.mxu0 0
    %176 = vmatpush1.bf16.msra.mxu0 0
    %177 = vmatprep.subr.bf16.mxu0 0
    %178 = vmatpush1.bf16.msra.mxu0 0
    %179 = vmatprep.subr.bf16.mxu0 0
    %180 = vmatpush1.bf16.msra.mxu0 0
    %181 = vmatprep.mubr.bf16.mxu0 0
    %182 = vmatmul.mubr.bf16.gmra.mrb[0].mxu0 %v77
    %v183 = vpop.f32.mrb[0].mxu0
    %v184 = vadd.f32 %v99, %v183
    %v185 = vpop.f32.mrb[0].mxu0
    %v186 = vpop.f32.mrb[0].mxu0
    %v187 = vadd.f32 %v99, %v186
    %v188 = vpop.f32.mrb[0].mxu0
    %189 = vdwg.mxu0
    %v190 = vmax.f32 %v184, 0.0
    %v191 = vmax.f32 %v187, 0.0
    %v192 = vld [vmem:[%s3] sm:$0xff]
    %v193 = vmul.f32 %v190, %v192
    %v194 = vmul.f32 %v191, %v192
    %v195 = vrot.slane %v193, 4
    %v196 = vmax.f32 %v193, %v195
    %v197 = vrot.slane %v196, 2
    %v198 = vmax.f32 %v196, %v197
    %v199 = vrot.slane %v198, 1
    %v200 = vmax.f32 %v198, %v199
    %v201 = vrot.slane %v194, 4
    %v202 = vmax.f32 %v194, %v201
    %v203 = vrot.slane %v202, 2
    %v204 = vmax.f32 %v202, %v203
    %v205 = vrot.slane %v204, 1
    %v206 = vmax.f32 %v204, %v205
    %v207 = vpack.c.bf16 %v200, %v200
    %v208 = vpack.c.bf16 %v206, %v206
    %v209 = vld [vmem:[%s4] sm:$0xf]
    %v210 = vld [vmem:[%s4 + $0x4] sm:$0xf]
    %v211 = vld [vmem:[%s4 + $0x8] sm:$0xf]
    %v212 = vld [vmem:[%s4 + $0xc] sm:$0xf]
    %v213 = vld [vmem:[%s4 + $0x10] sm:$0xf]
    %v214 = vld [vmem:[%s4 + $0x14] sm:$0xf]
    %v215 = vld [vmem:[%s4 + $0x18] sm:$0xf]
    %v216 = vld [vmem:[%s4 + $0x1c] sm:$0xf]
    %v217 = vld [vmem:[%s4 + $0x20] sm:$0xf]
    %v218 = vld [vmem:[%s4 + $0x24] sm:$0xf]
    %v219 = vld [vmem:[%s4 + $0x28] sm:$0xf]
    %v220 = vld [vmem:[%s4 + $0x2c] sm:$0xf]
    %v221 = vld [vmem:[%s4 + $0x30] sm:$0xf]
    %v222 = vld [vmem:[%s4 + $0x34] sm:$0xf]
    %v223 = vld [vmem:[%s4 + $0x38] sm:$0xf]
    %v224 = vld [vmem:[%s4 + $0x3c] sm:$0xf]
    %v225 = vld [vmem:[%s5] sm:$0x1]
    %v227 = vlaneseq
    %v228 = vshrl.u32 %v227, 7
    %v229 = vsub.s32 0, %v228
    %v230 = vrot.slane %v225, %v229
    %v234 = vunpack.c.l.b16 %v207
    %v235 = vunpack.c.l.b16 %v208
    %vm236 = vcmask 1041409
    %v237 = vsel %vm236, %v235, %v234
    %v238 = vpack.c.b16 %v237, %v237
    %v256 = vunpack.c.l.b16 %v209
    %v257 = vunpack.c.l.b16 %v210
    %v258 = vunpack.c.l.b16 %v211
    %v259 = vunpack.c.l.b16 %v212
    %v260 = vunpack.c.l.b16 %v213
    %v261 = vunpack.c.l.b16 %v214
    %v262 = vunpack.c.l.b16 %v215
    %v263 = vunpack.c.l.b16 %v216
    %v264 = vunpack.c.l.b16 %v217
    %v265 = vunpack.c.l.b16 %v218
    %v266 = vunpack.c.l.b16 %v219
    %v267 = vunpack.c.l.b16 %v220
    %v268 = vunpack.c.l.b16 %v221
    %v269 = vunpack.c.l.b16 %v222
    %v270 = vunpack.c.l.b16 %v223
    %v271 = vunpack.c.l.b16 %v224
    %v272 = vpack.c.b16 %v257, %v256
    %v273 = vpack.c.b16 %v259, %v258
    %v274 = vpack.c.b16 %v261, %v260
    %v275 = vpack.c.b16 %v263, %v262
    %v276 = vpack.c.b16 %v265, %v264
    %v277 = vpack.c.b16 %v267, %v266
    %v278 = vpack.c.b16 %v269, %v268
    %v279 = vpack.c.b16 %v271, %v270
    %288 = vmatprep.subr.bf16.mxu0 0
    %289 = vmatpush1.bf16.msra.mxu0 %v272
    %290 = vmatprep.subr.bf16.mxu0 0
    %291 = vmatpush1.bf16.msra.mxu0 %v273
    %292 = vmatprep.subr.bf16.mxu0 0
    %293 = vmatpush1.bf16.msra.mxu0 %v274
    %294 = vmatprep.subr.bf16.mxu0 0
    %295 = vmatpush1.bf16.msra.mxu0 %v275
    %296 = vmatprep.subr.bf16.mxu0 0
    %297 = vmatpush1.bf16.msra.mxu0 %v276
    %298 = vmatprep.subr.bf16.mxu0 0
    %299 = vmatpush1.bf16.msra.mxu0 %v277
    %300 = vmatprep.subr.bf16.mxu0 0
    %301 = vmatpush1.bf16.msra.mxu0 %v278
    %302 = vmatprep.subr.bf16.mxu0 0
    %303 = vmatpush1.bf16.msra.mxu0 %v279
    %304 = vmatprep.subr.bf16.mxu0 0
    %305 = vmatpush1.bf16.msra.mxu0 0
    %306 = vmatprep.subr.bf16.mxu0 0
    %307 = vmatpush1.bf16.msra.mxu0 0
    %308 = vmatprep.subr.bf16.mxu0 0
    %309 = vmatpush1.bf16.msra.mxu0 0
    %310 = vmatprep.subr.bf16.mxu0 0
    %311 = vmatpush1.bf16.msra.mxu0 0
    %312 = vmatprep.subr.bf16.mxu0 0
    %313 = vmatpush1.bf16.msra.mxu0 0
    %314 = vmatprep.subr.bf16.mxu0 0
    %315 = vmatpush1.bf16.msra.mxu0 0
    %316 = vmatprep.subr.bf16.mxu0 0
    %317 = vmatpush1.bf16.msra.mxu0 0
    %318 = vmatprep.subr.bf16.mxu0 0
    %319 = vmatpush1.bf16.msra.mxu0 0
    %320 = vmatprep.mubr.bf16.mxu0 0
    %321 = vmatmul.mubr.bf16.gmra.mrb[0].mxu0 %v238
    %v322 = vpop.f32.mrb[0].mxu0
    %v323 = vadd.f32 %v230, %v322
    %v324 = vpop.f32.mrb[0].mxu0
    %v325 = vpop.f32.mrb[0].mxu0
    %v326 = vpop.f32.mrb[0].mxu0
    %327 = vdwg.mxu0
    %328 = vst [vmem:[#allocation2] sm:$0x3] %v323
    // Predicated region
    $region26: #{cnn_forward.1} parent=1 // pred_check
      _
    $region27: #{cnn_forward.1} parent=1 // pred_check_branch
      %330 = sbr.rel (0) target = $region29
    $region28: #{cnn_forward.1} parent=1 // pred_region
      %s332 = ssub.s32 32, 32
      %333 = vsyncadd [#allocation3], %s332
      %s335 = sshll.u32 [#allocation2], 4
      %s336 = int_to_ptr.vmem [resolvable:$true] %s335
      %338 = dma.vmem_to_hbm [thread:$0]  %s336, 32, %s6, [#allocation3]
    $region29: #{cnn_forward.1} parent=1 // pred_fallthru
      _
    // Predicated region
    $region30: #{cnn_forward.1} parent=1 // pred_check
      _
    $region31: #{cnn_forward.1} parent=1 // pred_check_branch
      %340 = sbr.rel (0) target = $region33
    $region32: #{cnn_forward.1} parent=1 // pred_region
      %341 = dma.done [#allocation3], 32
    $region33: #{cnn_forward.1} parent=1 // pred_fallthru
      _
    %342 = vsyncpa [#allocation3], 1

</llo_original>
